<compile_context>
chip_gen: v7x
topology: tpu7x:2x2x1
jax: 0.10.0
libtpu: 0.0.40
codegen_flags: <defaults>
</compile_context>

<pallas_src>
import functools

import jax
import jax.numpy as jnp
from jax.experimental import pallas as pl
from jax.experimental.pallas import tpu as pltpu


def _round_up(x, m):
    return ((x + m - 1) // m) * m


def _cdiv(a, b):
    return -(-a // b)


def _choose_tiles(n, c, itemsize, vmem_limit, tile_n=None, c_chunk=None):
    """Pick (tile_n, num_row_tiles, c_chunk, num_class_tiles).

    Budget model (per row of a tile, with c_alloc = c_chunk rounded up to 128 lanes):
      input block, double-buffered .......... 2 * c_alloc * itemsize
      ~5 full-size f32 temporaries .......... 5 * c_alloc * 4
      lane-padded (T,1) columns (targets,
      m/l/picked scratch, focal temps) ...... ~4 KiB
    """
    sub = max(8, 32 // itemsize)                       # native sublane multiple
    budget = int(0.8 * vmem_limit)
    f32_temps = 5 * 4
    row_overhead = 4096

    # Class chunking (online log-sum-exp) only when a full-C row tile of >=256 rows
    # no longer fits the budget (roughly C >= 8-16K depending on dtype/chip).
    if c_chunk is None:
        full_c_row = _round_up(c, 128) * (2 * itemsize + f32_temps) + row_overhead
        if 256 * full_c_row <= budget or c <= 128:
            c_chunk = c
        else:
            c_chunk = max(
                128,
                ((budget // 512 - row_overhead) // (2 * itemsize + f32_temps)) // 128 * 128,
            )
    else:
        c_chunk = int(c_chunk)
        c_chunk = c if c_chunk >= c else _round_up(c_chunk, 128)
    if c_chunk >= c:
        c_chunk = c
    num_c = _cdiv(c, c_chunk)

    if tile_n is None:
        c_alloc = _round_up(c_chunk, 128)
        per_row = c_alloc * (2 * itemsize + f32_temps) + row_overhead
        tile_n = max(sub, min(budget // per_row, 8192))
    else:
        tile_n = max(sub, int(tile_n))
    tile_n = _round_up(tile_n, sub)
    if tile_n >= n:
        tile_n = n                                     # single tile spans all rows
    else:
        # Lane-dense 'none' output block needs tile_n % 128 == 0 when tiled.
        tile_n = max(128, (tile_n // 128) * 128)
        if tile_n >= n:
            tile_n = n
    num_n = _cdiv(n, tile_n)
    return tile_n, num_n, c_chunk, num_c


def _focal_kernel(logits_ref, target_ref, out_ref, m_sc, l_sc, p_sc, *,
                  gamma, n_rows, n_classes, tile_n, c_chunk, mode,
                  mask_rows, mask_cols):
    """Grid = (row tiles ["parallel"], class chunks ["arbitrary"]).

    Online log-sum-exp over the class chunks; focal loss computed and stored at the
    last class step.  mode == 'none' stores lane-dense per-row values, otherwise a
    per-row-tile partial sum is splat into a (1, 8, 128) block.
    """
    i = pl.program_id(0)
    k = pl.program_id(1)
    nk = pl.num_programs(1)

    @pl.when(k == 0)
    def _init():
        m_sc[...] = jnp.full_like(m_sc, -jnp.inf)
        l_sc[...] = jnp.zeros_like(l_sc)
        p_sc[...] = jnp.zeros_like(p_sc)

    x = logits_ref[...].astype(jnp.float32)                          # (tile_n, c_chunk)
    tgt = target_ref[...]                                            # (tile_n, 1) int32
    cls = k * c_chunk + jax.lax.broadcasted_iota(jnp.int32, x.shape, 1)
    if mask_cols:
        # Padded class columns of the final chunk must not affect max / sum-exp.
        x = jnp.where(cls < n_classes, x, -jnp.inf)

    m_prev = m_sc[...]
    m_new = jnp.maximum(m_prev, jnp.max(x, axis=-1, keepdims=True))
    alpha = jnp.exp(m_prev - m_new)
    l_sc[...] = alpha * l_sc[...] + jnp.sum(jnp.exp(x - m_new), axis=-1, keepdims=True)
    p_sc[...] = p_sc[...] + jnp.sum(jnp.where(cls == tgt, x, 0.0), axis=-1, keepdims=True)
    m_sc[...] = m_new

    @pl.when(k == nk - 1)
    def _finalize():
        ce = m_sc[...] + jnp.log(l_sc[...]) - p_sc[...]              # (tile_n, 1)
        # Focal weighting -- replicates the module's exp(+ce) for weights=None.
        prob = jnp.exp(ce)
        one_minus = 1.0 - prob
        g = float(gamma)
        if g.is_integer():
            pw = one_minus ** int(g)            # integer_pow: safe for negative base
        else:
            pw = jnp.power(one_minus, jnp.float32(g))   # torch: pow(neg, non-int) -> NaN
        focal = pw * ce                                              # (tile_n, 1)

        if mode == "none":
            # Lane-dense store: (tile_n, 1) -> (1, tile_n) (XLU transpose, has slack).
            out_ref[...] = jnp.transpose(focal, (1, 0))
        else:
            if mask_rows:
                row = i * tile_n + jax.lax.broadcasted_iota(jnp.int32, focal.shape, 0)
                focal = jnp.where(row < n_rows, focal, 0.0)
            s = jnp.sum(focal, keepdims=True)                        # (1, 1)
            out_ref[...] = jnp.broadcast_to(s, out_ref.shape)        # splat partial sum


def focal_loss(output, target, *, gamma=2.0, reduction="mean", tile_n=None, c_chunk=None):
    """output: (N, C) float logits (f32 or bf16 -- do NOT pre-upcast);
    target: (N,) integer class indices."""
    assert reduction in ("none", "mean", "sum"), "Invalid reduction option"
    n, c = output.shape
    itemsize = jnp.dtype(output.dtype).itemsize

    # Generation-aware scoped-VMEM limit: raise v5e's 16 MiB default, respect v7x's
    # 64 MiB physical ceiling.
    vmem_cap = 64 << 20  # conservative fallback (v7x-sized)
    try:
        vmem_cap = int(pltpu.get_tpu_info().vmem_capacity_bytes)
    except Exception:
        pass
    vmem_limit = int(min(vmem_cap // 2, 64 << 20))

    tile_n, num_n, c_chunk, num_c = _choose_tiles(n, c, itemsize, vmem_limit,
                                                  tile_n, c_chunk)
    n_pad = num_n * tile_n
    mask_rows = (n_pad != n)
    mask_cols = (num_c * c_chunk != c)

    target2d = target.astype(jnp.int32).reshape(n, 1)

    in_specs = [
        pl.BlockSpec((tile_n, c_chunk), lambda i, k: (i, k)),
        pl.BlockSpec((tile_n, 1), lambda i, k: (i, 0)),
    ]
    scratch = [pltpu.VMEM((tile_n, 1), jnp.float32)] * 3      # m / l / picked
    grid = (num_n, num_c)
    cparams = pltpu.CompilerParams(
        dimension_semantics=("parallel", "arbitrary"),
        vmem_limit_bytes=vmem_limit,
    )

    mode = "none" if reduction == "none" else "reduce"
    if reduction == "none":
        out_shape = jax.ShapeDtypeStruct((1, n_pad), jnp.float32)
        out_spec = pl.BlockSpec((1, tile_n), lambda i, k: (0, i))
        out_bytes = n_pad * 4
    else:
        out_shape = jax.ShapeDtypeStruct((num_n, 8, 128), jnp.float32)
        out_spec = pl.BlockSpec((1, 8, 128), lambda i, k: (i, 0, 0))
        out_bytes = num_n * 8 * 128 * 4

    cost = pl.CostEstimate(
        flops=8 * n * c,
        transcendentals=n * c + 3 * n,
        bytes_accessed=n * c * itemsize + n * 4 + out_bytes,
    )

    kernel = functools.partial(
        _focal_kernel, gamma=gamma, n_rows=n, n_classes=c,
        tile_n=tile_n, c_chunk=c_chunk, mode=mode,
        mask_rows=mask_rows, mask_cols=mask_cols,
    )

    res = pl.pallas_call(
        kernel,
        out_shape=out_shape,
        grid=grid,
        in_specs=in_specs,
        out_specs=out_spec,
        scratch_shapes=scratch,
        compiler_params=cparams,
        cost_estimate=cost,
    )(output, target2d)

    if reduction == "none":
        return res.reshape(-1)[:n]
    total = jnp.sum(res[:, 0, 0])
    if reduction == "mean":
        total = total * (1.0 / n)
    return total


def _focal_loss_ref(output, target, gamma=2.0, reduction="mean"):
    """Pure-JAX reference mirroring the PyTorch module (weights=None path)."""
    logits = output.astype(jnp.float32)
    lse = jax.nn.logsumexp(logits, axis=-1)
    picked = jnp.take_along_axis(logits, target[:, None].astype(jnp.int32), axis=-1)[:, 0]
    ce = lse - picked
    prob = jnp.exp(ce)
    focal = (1.0 - prob) ** gamma * ce
    if reduction == "mean":
        return focal.mean()
    if reduction == "sum":
        return focal.sum()
    return focal


if __name__ == "__main__":
    key = jax.random.PRNGKey(0)
    k1, k2, k3, k4, k5, k6 = jax.random.split(key, 6)

    # Case 1: default config (mean), f32 logits, single row tile, full-C class step.
    N1, C1 = 8, 32
    logits1 = jax.random.normal(k1, (N1, C1), dtype=jnp.float32)
    target1 = jax.random.randint(k2, (N1,), 0, C1, dtype=jnp.int32)
    out1 = jax.block_until_ready(focal_loss(logits1, target1, gamma=2.0, reduction="mean"))
    ref1 = _focal_loss_ref(logits1, target1, gamma=2.0, reduction="mean")
    assert jnp.allclose(out1, ref1, rtol=1e-5, atol=1e-5), (out1, ref1)

    # Case 2: bf16 logits fed narrow (no wrapper upcast), auto tiling, all reductions.
    N2, C2 = 40, 16
    logits2 = jax.random.normal(k3, (N2, C2), dtype=jnp.bfloat16)
    target2 = jax.random.randint(k4, (N2,), 0, C2, dtype=jnp.int32)
    for red in ("mean", "sum", "none"):
        out2 = jax.block_until_ready(focal_loss(logits2, target2, gamma=2.0, reduction=red))
        ref2 = _focal_loss_ref(logits2, target2, gamma=2.0, reduction=red)
        assert jnp.allclose(out2, ref2, rtol=1e-4, atol=1e-4), (red, out2, ref2)

    # Case 3: multi row tile with a partial final tile x chunked class axis with a
    # partial final chunk -- exercises the lane-dense 'none' output, the per-tile
    # partial-sum reduction, and the online log-sum-exp class loop.
    N3, C3 = 300, 200
    logits3 = jax.random.normal(k5, (N3, C3), dtype=jnp.float32)
    target3 = jax.random.randint(k6, (N3,), 0, C3, dtype=jnp.int32)
    for red in ("mean", "sum", "none"):
        out3 = jax.block_until_ready(
            focal_loss(logits3, target3, gamma=2.0, reduction=red, tile_n=128, c_chunk=128)
        )
        ref3 = _focal_loss_ref(logits3, target3, gamma=2.0, reduction=red)
        assert jnp.allclose(out3, ref3, rtol=1e-4, atol=1e-4), (red, out3, ref3)

    print("KERNEL_OK")
</pallas_src>

<mosaic_0001>
module attributes {stable_mosaic.version = 11 : i64} {
  func.func @_focal_kernel(%arg0: i32, %arg1: i32, %arg2: memref<8x32xf32, #tpu.memory_space<vmem>>, %arg3: memref<8x1xi32, #tpu.memory_space<vmem>>, %arg4: memref<1x8x128xf32, #tpu.memory_space<vmem>>, %arg5: memref<8x1xf32, #tpu.memory_space<vmem>>, %arg6: memref<8x1xf32, #tpu.memory_space<vmem>>, %arg7: memref<8x1xf32, #tpu.memory_space<vmem>>) attributes {dimension_semantics = [#tpu.dimension_semantics<parallel>, #tpu.dimension_semantics<arbitrary>], iteration_bounds = array<i64: 1, 1>, scalar_prefetch = 0 : i64, scratch_operands = 3 : i64, tpu.core_type = #tpu.core_type<tc>, window_params = [{transform_indices = @transform_0, window_bounds = array<i64: 8, 32>}, {transform_indices = @transform_1, window_bounds = array<i64: 8, 1>}, {transform_indices = @transform_2, window_bounds = array<i64: 1, 8, 128>}]} {
    %c0_i32 = arith.constant 0 : i32
    %0 = arith.cmpi eq, %arg1, %c0_i32 : i32
    %1 = arith.extui %0 : i1 to i32
    %c0_i32_0 = arith.constant 0 : i32
    %2 = arith.cmpi ne, %1, %c0_i32_0 : i32
    scf.if %2 {
      %cst_21 = arith.constant 0xFF800000 : f32
      %37 = vector.broadcast %cst_21 : f32 to vector<8x1xf32>
      %c0_22 = arith.constant 0 : index
      %c0_23 = arith.constant 0 : index
      %38 = vector.load %arg5[%c0_22, %c0_23] : memref<8x1xf32, #tpu.memory_space<vmem>>, vector<8x1xf32>
      tpu.vector_store %arg5[%c0_22, %c0_23], %37 {strides = array<i32>} : memref<8x1xf32, #tpu.memory_space<vmem>>, vector<8x1xf32>,
      %cst_24 = arith.constant 0.000000e+00 : f32
      %39 = vector.broadcast %cst_24 : f32 to vector<8x1xf32>
      %c0_25 = arith.constant 0 : index
      %c0_26 = arith.constant 0 : index
      %40 = vector.load %arg6[%c0_25, %c0_26] : memref<8x1xf32, #tpu.memory_space<vmem>>, vector<8x1xf32>
      tpu.vector_store %arg6[%c0_25, %c0_26], %39 {strides = array<i32>} : memref<8x1xf32, #tpu.memory_space<vmem>>, vector<8x1xf32>,
      %cst_27 = arith.constant 0.000000e+00 : f32
      %41 = vector.broadcast %cst_27 : f32 to vector<8x1xf32>
      %c0_28 = arith.constant 0 : index
      %c0_29 = arith.constant 0 : index
      %42 = vector.load %arg7[%c0_28, %c0_29] : memref<8x1xf32, #tpu.memory_space<vmem>>, vector<8x1xf32>
      tpu.vector_store %arg7[%c0_28, %c0_29], %41 {strides = array<i32>} : memref<8x1xf32, #tpu.memory_space<vmem>>, vector<8x1xf32>,
    } else {
    }
    %c0 = arith.constant 0 : index
    %c0_1 = arith.constant 0 : index
    %3 = vector.load %arg2[%c0, %c0_1] : memref<8x32xf32, #tpu.memory_space<vmem>>, vector<8x32xf32>
    %c0_2 = arith.constant 0 : index
    %c0_3 = arith.constant 0 : index
    %4 = vector.load %arg3[%c0_2, %c0_3] : memref<8x1xi32, #tpu.memory_space<vmem>>, vector<8x1xi32>
    %c32_i32 = arith.constant 32 : i32
    %5 = arith.muli %arg1, %c32_i32 : i32
    %6 = tpu.iota {dimensions = array<i32: 1>} : vector<8x32xi32>
    %7 = vector.broadcast %5 : i32 to vector<8x32xi32>
    %8 = arith.addi %7, %6 : vector<8x32xi32>
    %c0_4 = arith.constant 0 : index
    %c0_5 = arith.constant 0 : index
    %9 = vector.load %arg5[%c0_4, %c0_5] : memref<8x1xf32, #tpu.memory_space<vmem>>, vector<8x1xf32>
    %cst = arith.constant dense<0xFF800000> : vector<8xf32>
    %10 = vector.multi_reduction <maximumf>, %3, %cst [1] : vector<8x32xf32> to vector<8xf32>
    %11 = vector.shape_cast %10 : vector<8xf32> to vector<8x1xf32>
    %12 = arith.maximumf %9, %11 : vector<8x1xf32>
    %13 = arith.subf %9, %12 : vector<8x1xf32>
    %14 = math.exp %13 : vector<8x1xf32>
    %c0_6 = arith.constant 0 : index
    %c0_7 = arith.constant 0 : index
    %15 = vector.load %arg6[%c0_6, %c0_7] : memref<8x1xf32, #tpu.memory_space<vmem>>, vector<8x1xf32>
    %16 = arith.mulf %14, %15 : vector<8x1xf32>
    %17 = vector.broadcast %12 : vector<8x1xf32> to vector<8x32xf32>
    %18 = arith.subf %3, %17 : vector<8x32xf32>
    %19 = math.exp %18 : vector<8x32xf32>
    %cst_8 = arith.constant dense<0.000000e+00> : vector<8xf32>
    %20 = vector.multi_reduction <add>, %19, %cst_8 [1] : vector<8x32xf32> to vector<8xf32>
    %21 = vector.shape_cast %20 : vector<8xf32> to vector<8x1xf32>
    %22 = arith.addf %16, %21 : vector<8x1xf32>
    %c0_9 = arith.constant 0 : index
    %c0_10 = arith.constant 0 : index
    %23 = vector.load %arg6[%c0_9, %c0_10] : memref<8x1xf32, #tpu.memory_space<vmem>>, vector<8x1xf32>
    tpu.vector_store %arg6[%c0_9, %c0_10], %22 {strides = array<i32>} : memref<8x1xf32, #tpu.memory_space<vmem>>, vector<8x1xf32>,
    %c0_11 = arith.constant 0 : index
    %c0_12 = arith.constant 0 : index
    %24 = vector.load %arg7[%c0_11, %c0_12] : memref<8x1xf32, #tpu.memory_space<vmem>>, vector<8x1xf32>
    %25 = vector.broadcast %4 : vector<8x1xi32> to vector<8x32xi32>
    %26 = arith.cmpi eq, %8, %25 : vector<8x32xi32>
    %cst_13 = arith.constant 0.000000e+00 : f32
    %27 = vector.broadcast %cst_13 : f32 to vector<8x32xf32>
    %28 = arith.select %26, %3, %27 : vector<8x32xi1>, vector<8x32xf32>
    %cst_14 = arith.constant dense<0.000000e+00> : vector<8xf32>
    %29 = vector.multi_reduction <add>, %28, %cst_14 [1] : vector<8x32xf32> to vector<8xf32>
    %30 = vector.shape_cast %29 : vector<8xf32> to vector<8x1xf32>
    %31 = arith.addf %24, %30 : vector<8x1xf32>
    %c0_15 = arith.constant 0 : index
    %c0_16 = arith.constant 0 : index
    %32 = vector.load %arg7[%c0_15, %c0_16] : memref<8x1xf32, #tpu.memory_space<vmem>>, vector<8x1xf32>
    tpu.vector_store %arg7[%c0_15, %c0_16], %31 {strides = array<i32>} : memref<8x1xf32, #tpu.memory_space<vmem>>, vector<8x1xf32>,
    %c0_17 = arith.constant 0 : index
    %c0_18 = arith.constant 0 : index
    %33 = vector.load %arg5[%c0_17, %c0_18] : memref<8x1xf32, #tpu.memory_space<vmem>>, vector<8x1xf32>
    tpu.vector_store %arg5[%c0_17, %c0_18], %12 {strides = array<i32>} : memref<8x1xf32, #tpu.memory_space<vmem>>, vector<8x1xf32>,
    %c0_i32_19 = arith.constant 0 : i32
    %34 = arith.cmpi eq, %arg1, %c0_i32_19 : i32
    %35 = arith.extui %34 : i1 to i32
    %c0_i32_20 = arith.constant 0 : i32
    %36 = arith.cmpi ne, %35, %c0_i32_20 : i32
    scf.if %36 {
      %c0_21 = arith.constant 0 : index
      %c0_22 = arith.constant 0 : index
      %37 = vector.load %arg5[%c0_21, %c0_22] : memref<8x1xf32, #tpu.memory_space<vmem>>, vector<8x1xf32>
      %c0_23 = arith.constant 0 : index
      %c0_24 = arith.constant 0 : index
      %38 = vector.load %arg6[%c0_23, %c0_24] : memref<8x1xf32, #tpu.memory_space<vmem>>, vector<8x1xf32>
      %39 = math.log %38 : vector<8x1xf32>
      %40 = arith.addf %37, %39 : vector<8x1xf32>
      %c0_25 = arith.constant 0 : index
      %c0_26 = arith.constant 0 : index
      %41 = vector.load %arg7[%c0_25, %c0_26] : memref<8x1xf32, #tpu.memory_space<vmem>>, vector<8x1xf32>
      %42 = arith.subf %40, %41 : vector<8x1xf32>
      %43 = math.exp %42 : vector<8x1xf32>
      %cst_27 = arith.constant 1.000000e+00 : f32
      %44 = vector.broadcast %cst_27 : f32 to vector<8x1xf32>
      %45 = arith.subf %44, %43 : vector<8x1xf32>
      %46 = arith.mulf %45, %45 : vector<8x1xf32>
      %47 = arith.mulf %46, %42 : vector<8x1xf32>
      %48 = vector.shape_cast %47 : vector<8x1xf32> to vector<1x8x1xf32>
      %cst_28 = arith.constant dense<0.000000e+00> : vector<1xf32>
      %49 = vector.multi_reduction <add>, %48, %cst_28 [1, 2] : vector<1x8x1xf32> to vector<1xf32>
      %50 = vector.shape_cast %49 : vector<1xf32> to vector<1x1x1xf32>
      %51 = vector.extract %50[0, 0, 0] : f32 from vector<1x1x1xf32>
      %52 = vector.broadcast %51 : f32 to vector<1x1xf32>
      %53 = vector.shape_cast %52 : vector<1x1xf32> to vector<1x1x1xf32>
      %54 = vector.broadcast %53 : vector<1x1x1xf32> to vector<1x8x128xf32>
      %c0_29 = arith.constant 0 : index
      %c0_30 = arith.constant 0 : index
      %c0_31 = arith.constant 0 : index
      %55 = vector.load %arg4[%c0_29, %c0_30, %c0_31] : memref<1x8x128xf32, #tpu.memory_space<vmem>>, vector<1x8x128xf32>
      tpu.vector_store %arg4[%c0_29, %c0_30, %c0_31], %54 {strides = array<i32>} : memref<1x8x128xf32, #tpu.memory_space<vmem>>, vector<1x8x128xf32>,
    } else {
    }
    return
  }
  func.func @transform_0(%arg0: i32, %arg1: i32) -> (i32, i32) {
    %c0_i32 = arith.constant 0 : i32
    return %arg0, %arg1 : i32, i32
  }
  func.func @transform_1(%arg0: i32, %arg1: i32) -> (i32, i32) {
    %c0_i32 = arith.constant 0 : i32
    %c0_i32_0 = arith.constant 0 : i32
    return %arg0, %c0_i32 : i32, i32
  }
  func.func @transform_2(%arg0: i32, %arg1: i32) -> (i32, i32, i32) {
    %c0_i32 = arith.constant 0 : i32
    %c0_i32_0 = arith.constant 0 : i32
    %c0_i32_1 = arith.constant 0 : i32
    return %arg0, %c0_i32, %c0_i32_0 : i32, i32, i32
  }
}

</mosaic_0001>

<llo_original>
// kernel: tpu_custom_call.1
$region0: #{tpu_custom_call.1}
  #allocation0 [shape = 'u32[]', space=smem, size = 0x4, offset = 0x4, fixed_abs, tag = 'smem constant byte address 0x4 - core index']
  #allocation1 [shape = 'u32[144,128]{1,0:T(1,128)}', space=vmem, size = 0x12000, scoped, tag = 'internal scratch']
  #allocation2 [shape = 'f32[8,1]{1,0:T(8,128)}', space=vmem, size = 0x1000, scoped, tag = 'scratch operand']
  #allocation3 [shape = 'f32[8,1]{1,0:T(8,128)}', space=vmem, size = 0x1000, scoped, tag = 'scratch operand']
  #allocation4 [shape = 'f32[8,1]{1,0:T(8,128)}', space=vmem, size = 0x1000, scoped, tag = 'scratch operand']
  %s0 = inlined_call_operand.vmem [shape: f32[8,32], index: 0, kind: input, shape index: {}]
  %s1 = inlined_call_operand.vmem [shape: s32[8,1], index: 1, kind: input, shape index: {}]
  %s2 = inlined_call_operand.hbm [shape: f32[1,8,128], index: 2, kind: output, shape index: {}]
  %s3 = sld [smem:[#allocation0]]
  $region26: #{tpu_custom_call.1} parent=0
    _
  %s5 = ssub.s32 1, %s3
  %s6 = scalar_select 0, %s5, %s3
  $region1: #{tpu_custom_call.1} parent=0
    #allocation5 [shape = 'u8[4096]{0}', space=vmem, size = 0x1000, scoped, tag = 'output window, operand 0, single buffered']
    #allocation6 [shape = 's32[1]{0}', space=sflag, size = 0x4, scoped, tag = 'scoped memory for tpu_custom_call.1']
    %7 = vsyncpa [#allocation6], 0
    // Predicated region
    $region2: #{tpu_custom_call.1} parent=1 // pred_check
      _
    $region3: #{tpu_custom_call.1} parent=1 // pred_check_branch
      %9 = sbr.rel (0) target = $region5
    $region4: #{tpu_custom_call.1} parent=1 // pred_region
      _
    $region5: #{tpu_custom_call.1} parent=1 // pred_fallthru
      _
    // Predicated region
    $region6: #{tpu_custom_call.1} parent=1 // pred_check
      _
    $region7: #{tpu_custom_call.1} parent=1 // pred_check_branch
      %11 = sbr.rel (0) target = $region9
    $region8: #{tpu_custom_call.1} parent=1 // pred_region
      _
    $region9: #{tpu_custom_call.1} parent=1 // pred_fallthru
      _
    %p12 = scmp.eq.s32.totalorder 0, 0
    // Predicated region
    $region10: #{tpu_custom_call.1} parent=1 // pred_check
      %p13 = pneg %p12
    $region11: #{tpu_custom_call.1} parent=1 // pred_check_branch
      %15 = sbr.rel (%p13) target = $region13
    $region12: #{tpu_custom_call.1} parent=1 // pred_region
      %vm16 = vcmask 7168
      %17 = vst.msk [vmem:[#allocation2] sm:$0xff] %vm16, -inf
      %18 = vst.msk [vmem:[#allocation3] sm:$0xff] %vm16, 0.0
      %19 = vst.msk [vmem:[#allocation4] sm:$0xff] %vm16, 0.0
    $region13: #{tpu_custom_call.1} parent=1 // pred_fallthru
      _
    %v20 = vld [vmem:[%s0] sm:$0xff]
    %v21 = vld [vmem:[%s1] sm:$0xff]
    %s22 = smul.u32 0, 32
    %v23 = vlaneseq
    %v24 = vand.u32 %v23, 127
    %v25 = vstv %s22
    %v26 = vadd.s32 %v25, %v24
    %v27 = vld [vmem:[#allocation2] sm:$0xff]
    %vm28 = vcmask 261120
    %v29 = vsel %vm28, %v20, -inf
    %30 = vmax.xlane.f32.xlu0 %v29
    %v31 = vpop.xlane.xlu0 %30
    %v32 = vmax.f32 %v27, %v31
    %v33 = vsub.f32 %v27, %v32
    %v34 = vmul.f32 %v33, 1.442695
    %v35 = vpow.pop %v34
    %v36 = vld [vmem:[#allocation3] sm:$0xff]
    %v37 = vmul.f32 %v35, %v36
    %39 = vset.pattern.permute.xlu0 0
    %40 = vperm.xlu0 %39, %v32
    %v41 = vpop.permute.xlu0 %40
    %v43 = vsub.f32 %v20, %v41
    %v44 = vmul.f32 %v43, 1.442695
    %v45 = vpow.pop %v44
    %v46 = vsel %vm28, %v45, 0.0
    %47 = vadd.xlane.f32.xlu0 %v46
    %v48 = vpop.xlane.xlu0 %47
    %v49 = vadd.f32 %v37, %v48
    %vm50 = vcmask 7168
    %51 = vst.msk [vmem:[#allocation3] sm:$0xff] %vm50, %v49
    %v52 = vld [vmem:[#allocation4] sm:$0xff]
    %53 = vset.pattern.permute.xlu0 0
    %54 = vperm.xlu0 %53, %v21
    %v55 = vpop.permute.xlu0 %54
    %vm56 = vcmp.eq.s32.totalorder %v26, %v55
    %v57 = vsel %vm56, %v20, 0.0
    %v58 = vsel %vm28, %v57, 0.0
    %59 = vadd.xlane.f32.xlu0 %v58
    %v60 = vpop.xlane.xlu0 %59
    %v61 = vadd.f32 %v52, %v60
    %62 = vst.msk [vmem:[#allocation4] sm:$0xff] %vm50, %v61
    %63 = vst.msk [vmem:[#allocation2] sm:$0xff] %vm50, %v32
    // Predicated region
    $region14: #{tpu_custom_call.1} parent=1 // pred_check
      %p64 = pneg %p12
    $region15: #{tpu_custom_call.1} parent=1 // pred_check_branch
      %66 = sbr.rel (%p64) target = $region17
    $region16: #{tpu_custom_call.1} parent=1 // pred_region
      %v67 = vld [vmem:[#allocation2] sm:$0xff]
      %v68 = vld [vmem:[#allocation3] sm:$0xff]
      %v69 = vlog2.pop %v68
      %v70 = vmul.f32 %v69, 0.6931472
      %v71 = vadd.f32 %v67, %v70
      %v72 = vld [vmem:[#allocation4] sm:$0xff]
      %v73 = vsub.f32 %v71, %v72
      %v74 = vmul.f32 %v73, 1.442695
      %v75 = vpow.pop %v74
      %v76 = vsub.f32 1.0, %v75
      %v77 = vmul.f32 %v76, %v76
      %v78 = vmul.f32 %v77, %v73
      %v79 = vsel %vm50, %v78, 0.0
      %80 = vadd.xlane.f32.xlu0 %v79
      %v81 = vpop.xlane.xlu0 %80
      %v82 = vrot.slane %v81, 4
      %v83 = vadd.f32 %v81, %v82
      %v84 = vrot.slane %v83, 2
      %v85 = vadd.f32 %v83, %v84
      %v86 = vrot.slane %v85, 1
      %v87 = vadd.f32 %v85, %v86
      %s88 = vtos %v87
      %v89 = vstv %s88
      %90 = vst [vmem:[#allocation5] sm:$0xff] %v89
    $region17: #{tpu_custom_call.1} parent=1 // pred_fallthru
      _
    // Predicated region
    $region18: #{tpu_custom_call.1} parent=1 // pred_check
      _
    $region19: #{tpu_custom_call.1} parent=1 // pred_check_branch
      %92 = sbr.rel (0) target = $region21
    $region20: #{tpu_custom_call.1} parent=1 // pred_region
      %s94 = ssub.s32 128, 128
      %95 = vsyncadd [#allocation6], %s94
      %s97 = sshll.u32 [#allocation5], 4
      %s98 = int_to_ptr.vmem [resolvable:$true] %s97
      %100 = dma.vmem_to_hbm [thread:$0]  %s98, 128, %s2, [#allocation6]
    $region21: #{tpu_custom_call.1} parent=1 // pred_fallthru
      _
    // Predicated region
    $region22: #{tpu_custom_call.1} parent=1 // pred_check
      _
    $region23: #{tpu_custom_call.1} parent=1 // pred_check_branch
      %102 = sbr.rel (0) target = $region25
    $region24: #{tpu_custom_call.1} parent=1 // pred_region
      %103 = dma.done [#allocation6], 128
    $region25: #{tpu_custom_call.1} parent=1 // pred_fallthru
      _
    %104 = vsyncpa [#allocation6], 1

</llo_original>
